<compile_context>
chip_gen: v7x
topology: tpu7x:2x2x1
jax: 0.10.0
libtpu: 0.0.40
codegen_flags: <defaults>
</compile_context>

<pallas_src>
import functools

import jax
import jax.numpy as jnp
from jax.experimental import pallas as pl
from jax.experimental.pallas import tpu as pltpu

EPS = 1e-5  # nn.LayerNorm default


def _round_up(a, b):
    return (a + b - 1) // b * b


# ---------------------------------------------------------------------------
# Kernel
# ---------------------------------------------------------------------------
def prenorm_residual_kernel(
    x_ref,                    # (TM, Dp) io-dtype row tile
    wfn_ref, bfn_ref,         # fn = Linear(dim, dim), LN1 affine folded in
    w1_ref, bb1_ref,          # mlp Linear #1, LN2 affine folded in
    w2_ref, bb2_ref,          # mlp Linear #2
    o_ref,
    *, inv_d, n_pad_cols, approx_gelu,
):
    x = x_ref[...].astype(jnp.float32)

    # ---- LayerNorm 1 (affine folded into wfn/bfn).  Centered variance; padded
    # columns of x are zero, correct their contribution exactly.
    mu1 = jnp.sum(x, axis=-1, keepdims=True) * inv_d
    xc1 = x - mu1
    var1 = jnp.sum(xc1 * xc1, axis=-1, keepdims=True)
    if n_pad_cols:
        var1 = var1 - n_pad_cols * (mu1 * mu1)
    var1 = var1 * inv_d
    # bf16 cast fused into the LN epilogue: no f32 xn kept live across the matmul.
    xn_b = (xc1 * jax.lax.rsqrt(var1 + EPS)).astype(jnp.bfloat16)

    # ---- fn(norm1(x)) + x    (bf16 MXU matmul, f32 accumulation)
    h = jnp.dot(xn_b, wfn_ref[...], preferred_element_type=jnp.float32) + bfn_ref[...]
    out1 = h + x

    # ---- LayerNorm 2 (affine folded into w1/bb1)
    mu2 = jnp.sum(out1, axis=-1, keepdims=True) * inv_d
    yc = out1 - mu2
    var2 = jnp.sum(yc * yc, axis=-1, keepdims=True)
    if n_pad_cols:
        var2 = var2 - n_pad_cols * (mu2 * mu2)
    var2 = var2 * inv_d
    yn_b = (yc * jax.lax.rsqrt(var2 + EPS)).astype(jnp.bfloat16)

    # ---- mlp: Linear -> GELU -> Linear
    m = jnp.dot(yn_b, w1_ref[...], preferred_element_type=jnp.float32) + bb1_ref[...]
    # tanh GELU dispatches to the EUP slot (nearly free next to MXU work);
    # exact erf is a long VPU polynomial on the serial critical path.
    m_b = jax.nn.gelu(m, approximate=approx_gelu).astype(jnp.bfloat16)
    m2 = jnp.dot(m_b, w2_ref[...], preferred_element_type=jnp.float32) + bb2_ref[...]

    # ---- second residual adds the ORIGINAL x (matches the PyTorch forward)
    o_ref[...] = (m2 + x).astype(o_ref.dtype)


# ---------------------------------------------------------------------------
# Wrapper helpers
# ---------------------------------------------------------------------------
def _prepare_params(p, d_pad):
    """Fold LN affine into the following Linear, zero-pad to d_pad, cast W->bf16."""
    d = p["wfn"].shape[0]
    wfn = p["g1"][:, None] * p["wfn"]
    bfn = p["b1"] @ p["wfn"] + p["bfn"]
    w1 = p["g2"][:, None] * p["w1"]
    bb1 = p["b2"] @ p["w1"] + p["bb1"]
    w2 = p["w2"]
    bb2 = p["bb2"]

    def pad_mat(w):
        return jnp.pad(w, ((0, d_pad - d), (0, d_pad - d))).astype(jnp.bfloat16)

    def pad_vec(b):
        return jnp.pad(b, (0, d_pad - d)).reshape(1, d_pad).astype(jnp.float32)

    return (pad_mat(wfn), pad_vec(bfn),
            pad_mat(w1), pad_vec(bb1),
            pad_mat(w2), pad_vec(bb2))


def _vmem_budget_bytes():
    """Per-generation VMEM budget with headroom for compiler scratch."""
    cap = None
    try:
        cap = getattr(pltpu.get_tpu_info(), "vmem_capacity_bytes", None)
    except Exception:
        cap = None
    if not cap:
        cap = 64 * 1024 * 1024            # conservative: v7x per-TensorCore VMEM
    # ~52 MiB on v7x (64 MiB), capped at 112 MiB on the 128 MiB parts.
    return int(min(cap - 12 * 1024 * 1024, 112 * 1024 * 1024))


def _pick_tm(d_pad, io_bytes, budget, weights_bytes):
    """Largest row tile whose working set fits the VMEM budget."""
    # Per-row estimate: x and out tiles double-buffered (io dtype) plus ~5 f32
    # intermediates (x, out1, matmul results, LN temporaries) live at once.
    per_row = d_pad * (2 * 2 * io_bytes + 5 * 4)
    avail = budget - weights_bytes
    for cand in (1024, 512, 256, 128, 64, 32, 16, 8):
        if cand * per_row <= avail:
            return cand
    return 8


# ---------------------------------------------------------------------------
# Wrapper
# ---------------------------------------------------------------------------
def prenorm_residual(x, params, *, tm=None, approx_gelu=True, io_dtype=jnp.bfloat16):
    """x: (B, N, D).  params: f32 module params (see init_params)."""
    B, N, D = x.shape
    M = B * N
    d_pad = _round_up(D, 128)
    io_bytes = jnp.dtype(io_dtype).itemsize

    budget = _vmem_budget_bytes()
    weights_bytes = 3 * d_pad * d_pad * 2 + 3 * d_pad * 4  # bf16 mats + f32 biases
    if weights_bytes > (2 * budget) // 3:
        # TODO(synk): K/N-tile the three matmuls (extra grid axis over k with an
        # f32 VMEM accumulator and pl.when init/finalize) for D where the resident
        # DxD weights exceed the VMEM budget (D >= ~2048 on v7x).
        raise NotImplementedError(
            f"dim={D}: resident weights ({weights_bytes >> 20} MiB) exceed the "
            f"VMEM budget ({budget >> 20} MiB); K-tiled fallback not implemented")

    tm_auto = _pick_tm(d_pad, io_bytes, budget, weights_bytes)
    if tm is not None:
        tm_auto = min(tm_auto, tm)
    # Clamp for small inputs, but keep grid >= 2 whenever M > 8 so both v7x
    # TensorCores get work under dimension_semantics=("parallel",).
    tm_eff = min(tm_auto, _round_up(max(M // 2, 8), 8))
    m_pad = _round_up(M, tm_eff)
    grid = m_pad // tm_eff

    x2 = x.reshape(M, D).astype(io_dtype)
    if m_pad != M or d_pad != D:
        x2 = jnp.pad(x2, ((0, m_pad - M), (0, d_pad - D)))

    wfn, bfn, w1, bb1, w2, bb2 = _prepare_params(params, d_pad)

    row_spec = pl.BlockSpec((tm_eff, d_pad), lambda i: (i, 0))
    # Constant index_map -> single pipeline buffer: halves resident weight VMEM
    # with zero DMA cost (blocks never change across grid steps).
    mat_spec = pl.BlockSpec((d_pad, d_pad), lambda i: (0, 0),
                            pipeline_mode=pl.Buffered(1))
    vec_spec = pl.BlockSpec((1, d_pad), lambda i: (0, 0),
                            pipeline_mode=pl.Buffered(1))

    cost = pl.CostEstimate(
        flops=int(3 * 2 * m_pad * d_pad * d_pad),
        transcendentals=int(m_pad * d_pad + 2 * m_pad),
        bytes_accessed=int(2 * m_pad * d_pad * io_bytes
                           + 3 * d_pad * d_pad * 2 + 3 * d_pad * 4),
    )

    out = pl.pallas_call(
        functools.partial(prenorm_residual_kernel,
                          inv_d=1.0 / D,
                          n_pad_cols=float(d_pad - D),
                          approx_gelu=approx_gelu),
        out_shape=jax.ShapeDtypeStruct((m_pad, d_pad), io_dtype),
        grid_spec=pltpu.PrefetchScalarGridSpec(
            num_scalar_prefetch=0,
            grid=(grid,),
            in_specs=[
                row_spec,               # x row tile
                mat_spec, vec_spec,     # fn W', b'
                mat_spec, vec_spec,     # mlp W1', b1'
                mat_spec, vec_spec,     # mlp W2, b2
            ],
            out_specs=row_spec,
        ),
        compiler_params=pltpu.CompilerParams(
            dimension_semantics=("parallel",),
            vmem_limit_bytes=budget,
        ),
        cost_estimate=cost,
    )(x2, wfn, bfn, w1, bb1, w2, bb2)

    return out[:M, :D].reshape(B, N, D).astype(x.dtype)


# ---------------------------------------------------------------------------
# Deterministic synthetic params + pure-JAX reference (mirrors PyTorch forward)
# ---------------------------------------------------------------------------
def init_params(key, dim):
    """Linear weights stored (in, out) so the kernel computes x @ W + b
    (== PyTorch's x @ W_pt.T + b).  Non-trivial gamma/beta so affine folding
    is actually exercised."""
    ks = jax.random.split(key, 10)
    scale = 1.0 / (dim ** 0.5)
    u = lambda k, shp: jax.random.uniform(k, shp, jnp.float32, -scale, scale)
    return {
        "g1": 1.0 + 0.1 * jax.random.normal(ks[0], (dim,), jnp.float32),
        "b1": 0.1 * jax.random.normal(ks[1], (dim,), jnp.float32),
        "wfn": u(ks[2], (dim, dim)), "bfn": u(ks[3], (dim,)),
        "g2": 1.0 + 0.1 * jax.random.normal(ks[4], (dim,), jnp.float32),
        "b2": 0.1 * jax.random.normal(ks[5], (dim,), jnp.float32),
        "w1": u(ks[6], (dim, dim)), "bb1": u(ks[7], (dim,)),
        "w2": u(ks[8], (dim, dim)), "bb2": u(ks[9], (dim,)),
    }


def reference(x, p):
    """Pure-JAX f32 reference mirroring the PyTorch forward exactly (exact GELU)."""
    def ln(v, g, b):
        mu = jnp.mean(v, axis=-1, keepdims=True)
        var = jnp.mean((v - mu) ** 2, axis=-1, keepdims=True)
        return (v - mu) * jax.lax.rsqrt(var + EPS) * g + b

    out = ln(x, p["g1"], p["b1"]) @ p["wfn"] + p["bfn"] + x
    m = jax.nn.gelu(ln(out, p["g2"], p["b2"]) @ p["w1"] + p["bb1"], approximate=False)
    return m @ p["w2"] + p["bb2"] + x


# ---------------------------------------------------------------------------
if __name__ == "__main__":
    key = jax.random.PRNGKey(0)

    # bf16 matmuls/IO + tanh GELU vs f32 exact reference -> relaxed tolerance.
    ATOL = RTOL = 3e-2

    # Test 1: lane-dense dim (D multiple of 128); M small enough that the
    # grid>=2 clamp kicks in (two row tiles of 16).
    k1, k2, kp1 = jax.random.split(key, 3)
    B, N, D = 2, 16, 128
    x = jax.random.normal(k1, (B, N, D), jnp.float32)
    params = init_params(kp1, D)
    out = jax.block_until_ready(prenorm_residual(x, params))
    ref = reference(x, params)
    assert out.shape == (B, N, D)
    assert jnp.allclose(out, ref, atol=ATOL, rtol=RTOL), "mismatch vs reference (D=128)"

    # Test 2: ragged shapes (M not multiple of 8, D not multiple of 128) exercise padding.
    k3, kp2 = jax.random.split(k2)
    B2, N2, D2 = 1, 5, 96
    x2 = jax.random.normal(k3, (B2, N2, D2), jnp.float32)
    params2 = init_params(kp2, D2)
    out2 = jax.block_until_ready(prenorm_residual(x2, params2))
    ref2 = reference(x2, params2)
    assert out2.shape == (B2, N2, D2)
    assert jnp.allclose(out2, ref2, atol=ATOL, rtol=RTOL), "mismatch vs reference (D=96)"

    # Test 3: exact-erf GELU path (bit-closer to PyTorch nn.GELU()).
    out3 = jax.block_until_ready(prenorm_residual(x, params, approx_gelu=False))
    assert jnp.allclose(out3, ref, atol=ATOL, rtol=RTOL), "mismatch vs reference (exact GELU)"

    print("KERNEL_OK")
</pallas_src>

<mosaic_0001>
module attributes {stable_mosaic.version = 11 : i64} {
  func.func @prenorm_residual_kernel(%arg0: i32, %arg1: memref<16x128xbf16, #tpu.memory_space<vmem>>, %arg2: memref<128x128xbf16, #tpu.memory_space<vmem>>, %arg3: memref<1x128xf32, #tpu.memory_space<vmem>>, %arg4: memref<128x128xbf16, #tpu.memory_space<vmem>>, %arg5: memref<1x128xf32, #tpu.memory_space<vmem>>, %arg6: memref<128x128xbf16, #tpu.memory_space<vmem>>, %arg7: memref<1x128xf32, #tpu.memory_space<vmem>>, %arg8: memref<16x128xbf16, #tpu.memory_space<vmem>>) attributes {dimension_semantics = [#tpu.dimension_semantics<parallel>], iteration_bounds = array<i64: 2>, scalar_prefetch = 0 : i64, scratch_operands = 0 : i64, tpu.core_type = #tpu.core_type<tc>, window_params = [{transform_indices = @transform_0, window_bounds = array<i64: 16, 128>}, {pipeline_mode = #tpu.pipeline_mode<synchronous>, transform_indices = @transform_1, window_bounds = array<i64: 128, 128>}, {pipeline_mode = #tpu.pipeline_mode<synchronous>, transform_indices = @transform_2, window_bounds = array<i64: 1, 128>}, {pipeline_mode = #tpu.pipeline_mode<synchronous>, transform_indices = @transform_3, window_bounds = array<i64: 128, 128>}, {pipeline_mode = #tpu.pipeline_mode<synchronous>, transform_indices = @transform_4, window_bounds = array<i64: 1, 128>}, {pipeline_mode = #tpu.pipeline_mode<synchronous>, transform_indices = @transform_5, window_bounds = array<i64: 128, 128>}, {pipeline_mode = #tpu.pipeline_mode<synchronous>, transform_indices = @transform_6, window_bounds = array<i64: 1, 128>}, {transform_indices = @transform_7, window_bounds = array<i64: 16, 128>}]} {
    %c0 = arith.constant 0 : index
    %c0_0 = arith.constant 0 : index
    %0 = vector.load %arg1[%c0, %c0_0] : memref<16x128xbf16, #tpu.memory_space<vmem>>, vector<16x128xbf16>
    %1 = arith.extf %0 : vector<16x128xbf16> to vector<16x128xf32>
    %cst = arith.constant dense<0.000000e+00> : vector<16xf32>
    %2 = vector.multi_reduction <add>, %1, %cst [1] : vector<16x128xf32> to vector<16xf32>
    %3 = vector.shape_cast %2 : vector<16xf32> to vector<16x1xf32>
    %cst_1 = arith.constant 7.812500e-03 : f32
    %4 = vector.broadcast %cst_1 : f32 to vector<16x1xf32>
    %5 = arith.mulf %3, %4 : vector<16x1xf32>
    %6 = vector.broadcast %5 : vector<16x1xf32> to vector<16x128xf32>
    %7 = arith.subf %1, %6 : vector<16x128xf32>
    %8 = arith.mulf %7, %7 : vector<16x128xf32>
    %cst_2 = arith.constant dense<0.000000e+00> : vector<16xf32>
    %9 = vector.multi_reduction <add>, %8, %cst_2 [1] : vector<16x128xf32> to vector<16xf32>
    %10 = vector.shape_cast %9 : vector<16xf32> to vector<16x1xf32>
    %cst_3 = arith.constant 7.812500e-03 : f32
    %11 = vector.broadcast %cst_3 : f32 to vector<16x1xf32>
    %12 = arith.mulf %10, %11 : vector<16x1xf32>
    %cst_4 = arith.constant 9.99999974E-6 : f32
    %13 = vector.broadcast %cst_4 : f32 to vector<16x1xf32>
    %14 = arith.addf %12, %13 : vector<16x1xf32>
    %15 = math.rsqrt %14 : vector<16x1xf32>
    %16 = vector.broadcast %15 : vector<16x1xf32> to vector<16x128xf32>
    %17 = arith.mulf %7, %16 : vector<16x128xf32>
    %18 = arith.truncf %17 : vector<16x128xf32> to vector<16x128xbf16>
    %c0_5 = arith.constant 0 : index
    %c0_6 = arith.constant 0 : index
    %19 = vector.load %arg2[%c0_5, %c0_6] : memref<128x128xbf16, #tpu.memory_space<vmem>>, vector<128x128xbf16>
    %cst_7 = arith.constant dense<0.000000e+00> : vector<16x128xf32>
    %20 = tpu.matmul %18, %19, %cst_7 {dimension_numbers = #tpu.dot_dimension_numbers<[1], [0], [0], [1], [0, 0, 1, 1], [], []>} : vector<16x128xbf16>, vector<128x128xbf16>, vector<16x128xf32> -> vector<16x128xf32>
    %c0_8 = arith.constant 0 : index
    %c0_9 = arith.constant 0 : index
    %21 = vector.load %arg3[%c0_8, %c0_9] : memref<1x128xf32, #tpu.memory_space<vmem>>, vector<1x128xf32>
    %22 = vector.broadcast %21 : vector<1x128xf32> to vector<16x128xf32>
    %23 = arith.addf %20, %22 : vector<16x128xf32>
    %24 = arith.addf %23, %1 : vector<16x128xf32>
    %cst_10 = arith.constant dense<0.000000e+00> : vector<16xf32>
    %25 = vector.multi_reduction <add>, %24, %cst_10 [1] : vector<16x128xf32> to vector<16xf32>
    %26 = vector.shape_cast %25 : vector<16xf32> to vector<16x1xf32>
    %cst_11 = arith.constant 7.812500e-03 : f32
    %27 = vector.broadcast %cst_11 : f32 to vector<16x1xf32>
    %28 = arith.mulf %26, %27 : vector<16x1xf32>
    %29 = vector.broadcast %28 : vector<16x1xf32> to vector<16x128xf32>
    %30 = arith.subf %24, %29 : vector<16x128xf32>
    %31 = arith.mulf %30, %30 : vector<16x128xf32>
    %cst_12 = arith.constant dense<0.000000e+00> : vector<16xf32>
    %32 = vector.multi_reduction <add>, %31, %cst_12 [1] : vector<16x128xf32> to vector<16xf32>
    %33 = vector.shape_cast %32 : vector<16xf32> to vector<16x1xf32>
    %cst_13 = arith.constant 7.812500e-03 : f32
    %34 = vector.broadcast %cst_13 : f32 to vector<16x1xf32>
    %35 = arith.mulf %33, %34 : vector<16x1xf32>
    %cst_14 = arith.constant 9.99999974E-6 : f32
    %36 = vector.broadcast %cst_14 : f32 to vector<16x1xf32>
    %37 = arith.addf %35, %36 : vector<16x1xf32>
    %38 = math.rsqrt %37 : vector<16x1xf32>
    %39 = vector.broadcast %38 : vector<16x1xf32> to vector<16x128xf32>
    %40 = arith.mulf %30, %39 : vector<16x128xf32>
    %41 = arith.truncf %40 : vector<16x128xf32> to vector<16x128xbf16>
    %c0_15 = arith.constant 0 : index
    %c0_16 = arith.constant 0 : index
    %42 = vector.load %arg4[%c0_15, %c0_16] : memref<128x128xbf16, #tpu.memory_space<vmem>>, vector<128x128xbf16>
    %cst_17 = arith.constant dense<0.000000e+00> : vector<16x128xf32>
    %43 = tpu.matmul %41, %42, %cst_17 {dimension_numbers = #tpu.dot_dimension_numbers<[1], [0], [0], [1], [0, 0, 1, 1], [], []>} : vector<16x128xbf16>, vector<128x128xbf16>, vector<16x128xf32> -> vector<16x128xf32>
    %c0_18 = arith.constant 0 : index
    %c0_19 = arith.constant 0 : index
    %44 = vector.load %arg5[%c0_18, %c0_19] : memref<1x128xf32, #tpu.memory_space<vmem>>, vector<1x128xf32>
    %45 = vector.broadcast %44 : vector<1x128xf32> to vector<16x128xf32>
    %46 = arith.addf %43, %45 : vector<16x128xf32>
    %47 = arith.mulf %46, %46 : vector<16x128xf32>
    %48 = arith.mulf %46, %47 : vector<16x128xf32>
    %cst_20 = arith.constant 4.471500e-02 : f32
    %49 = vector.broadcast %cst_20 : f32 to vector<16x128xf32>
    %50 = arith.mulf %49, %48 : vector<16x128xf32>
    %51 = arith.addf %46, %50 : vector<16x128xf32>
    %cst_21 = arith.constant 0.797884583 : f32
    %52 = vector.broadcast %cst_21 : f32 to vector<16x128xf32>
    %53 = arith.mulf %52, %51 : vector<16x128xf32>
    %54 = math.tanh %53 : vector<16x128xf32>
    %cst_22 = arith.constant 1.000000e+00 : f32
    %55 = vector.broadcast %cst_22 : f32 to vector<16x128xf32>
    %56 = arith.addf %55, %54 : vector<16x128xf32>
    %cst_23 = arith.constant 5.000000e-01 : f32
    %57 = vector.broadcast %cst_23 : f32 to vector<16x128xf32>
    %58 = arith.mulf %57, %56 : vector<16x128xf32>
    %59 = arith.mulf %46, %58 : vector<16x128xf32>
    %60 = arith.truncf %59 : vector<16x128xf32> to vector<16x128xbf16>
    %c0_24 = arith.constant 0 : index
    %c0_25 = arith.constant 0 : index
    %61 = vector.load %arg6[%c0_24, %c0_25] : memref<128x128xbf16, #tpu.memory_space<vmem>>, vector<128x128xbf16>
    %cst_26 = arith.constant dense<0.000000e+00> : vector<16x128xf32>
    %62 = tpu.matmul %60, %61, %cst_26 {dimension_numbers = #tpu.dot_dimension_numbers<[1], [0], [0], [1], [0, 0, 1, 1], [], []>} : vector<16x128xbf16>, vector<128x128xbf16>, vector<16x128xf32> -> vector<16x128xf32>
    %c0_27 = arith.constant 0 : index
    %c0_28 = arith.constant 0 : index
    %63 = vector.load %arg7[%c0_27, %c0_28] : memref<1x128xf32, #tpu.memory_space<vmem>>, vector<1x128xf32>
    %64 = vector.broadcast %63 : vector<1x128xf32> to vector<16x128xf32>
    %65 = arith.addf %62, %64 : vector<16x128xf32>
    %66 = arith.addf %65, %1 : vector<16x128xf32>
    %67 = arith.truncf %66 : vector<16x128xf32> to vector<16x128xbf16>
    %c0_29 = arith.constant 0 : index
    %c0_30 = arith.constant 0 : index
    %68 = vector.load %arg8[%c0_29, %c0_30] : memref<16x128xbf16, #tpu.memory_space<vmem>>, vector<16x128xbf16>
    tpu.vector_store %arg8[%c0_29, %c0_30], %67 {strides = array<i32>} : memref<16x128xbf16, #tpu.memory_space<vmem>>, vector<16x128xbf16>,
    return
  }
  func.func @transform_0(%arg0: i32) -> (i32, i32) {
    %c0_i32 = arith.constant 0 : i32
    %c0_i32_0 = arith.constant 0 : i32
    return %arg0, %c0_i32 : i32, i32
  }
  func.func @transform_1(%arg0: i32) -> (i32, i32) {
    %c0_i32 = arith.constant 0 : i32
    %c0_i32_0 = arith.constant 0 : i32
    %c0_i32_1 = arith.constant 0 : i32
    return %c0_i32, %c0_i32_0 : i32, i32
  }
  func.func @transform_2(%arg0: i32) -> (i32, i32) {
    %c0_i32 = arith.constant 0 : i32
    %c0_i32_0 = arith.constant 0 : i32
    %c0_i32_1 = arith.constant 0 : i32
    return %c0_i32, %c0_i32_0 : i32, i32
  }
  func.func @transform_3(%arg0: i32) -> (i32, i32) {
    %c0_i32 = arith.constant 0 : i32
    %c0_i32_0 = arith.constant 0 : i32
    %c0_i32_1 = arith.constant 0 : i32
    return %c0_i32, %c0_i32_0 : i32, i32
  }
  func.func @transform_4(%arg0: i32) -> (i32, i32) {
    %c0_i32 = arith.constant 0 : i32
    %c0_i32_0 = arith.constant 0 : i32
    %c0_i32_1 = arith.constant 0 : i32
    return %c0_i32, %c0_i32_0 : i32, i32
  }
  func.func @transform_5(%arg0: i32) -> (i32, i32) {
    %c0_i32 = arith.constant 0 : i32
    %c0_i32_0 = arith.constant 0 : i32
    %c0_i32_1 = arith.constant 0 : i32
    return %c0_i32, %c0_i32_0 : i32, i32
  }
  func.func @transform_6(%arg0: i32) -> (i32, i32) {
    %c0_i32 = arith.constant 0 : i32
    %c0_i32_0 = arith.constant 0 : i32
    %c0_i32_1 = arith.constant 0 : i32
    return %c0_i32, %c0_i32_0 : i32, i32
  }
  func.func @transform_7(%arg0: i32) -> (i32, i32) {
    %c0_i32 = arith.constant 0 : i32
    %c0_i32_0 = arith.constant 0 : i32
    return %arg0, %c0_i32 : i32, i32
  }
}

</mosaic_0001>

<llo_original>
// kernel: tpu_custom_call.1
$region0: #{tpu_custom_call.1}
  #allocation0 [shape = 'u32[]', space=smem, size = 0x4, offset = 0x4, fixed_abs, tag = 'smem constant byte address 0x4 - core index']
  #allocation1 [shape = 'u32[144,128]{1,0:T(1,128)}', space=vmem, size = 0x12000, scoped, tag = 'internal scratch']
  %s0 = inlined_call_operand.hbm [shape: bf16[32,128], index: 0, kind: input, shape index: {}]
  %s1 = inlined_call_operand.hbm [shape: bf16[128,128], index: 1, kind: input, shape index: {}]
  %s2 = inlined_call_operand.vmem [shape: f32[1,128], index: 2, kind: input, shape index: {}]
  %s3 = inlined_call_operand.hbm [shape: bf16[128,128], index: 3, kind: input, shape index: {}]
  %s4 = inlined_call_operand.vmem [shape: f32[1,128], index: 4, kind: input, shape index: {}]
  %s5 = inlined_call_operand.hbm [shape: bf16[128,128], index: 5, kind: input, shape index: {}]
  %s6 = inlined_call_operand.vmem [shape: f32[1,128], index: 6, kind: input, shape index: {}]
  %s7 = inlined_call_operand.hbm [shape: bf16[32,128], index: 7, kind: output, shape index: {}]
  %s8 = sld [smem:[#allocation0]]
  $region77: #{tpu_custom_call.1} parent=0
    _
  %s10 = ssub.s32 1, %s8
  %s11 = scalar_select 0, %s10, %s8
  $region1: #{tpu_custom_call.1} parent=0
    #allocation2 [shape = 'u8[8192]{0}', space=vmem, size = 0x2000, scoped, tag = 'input window, operand 0']
    #allocation3 [shape = 's32[2]{0}', space=sflag, size = 0x8, scoped, tag = 'scoped memory for tpu_custom_call.1']
    #allocation4 [shape = 's32[2]{0}', space=sflag, size = 0x8, scoped, tag = 'scoped memory for tpu_custom_call.1']
    #allocation5 [shape = 'u8[32768]{0}', space=vmem, size = 0x8000, scoped, tag = 'input window, operand 1, single buffered']
    #allocation6 [shape = 's32[1]{0}', space=sflag, size = 0x4, scoped, tag = 'scoped memory for tpu_custom_call.1']
    #allocation7 [shape = 'u8[32768]{0}', space=vmem, size = 0x8000, scoped, tag = 'input window, operand 3, single buffered']
    #allocation8 [shape = 'u8[32768]{0}', space=vmem, size = 0x8000, scoped, tag = 'input window, operand 5, single buffered']
    #allocation9 [shape = 's32[1]{0}', space=sflag, size = 0x4, scoped, tag = 'scoped memory for tpu_custom_call.1']
    #allocation10 [shape = 'u8[8192]{0}', space=vmem, size = 0x2000, scoped, tag = 'output window, operand 0']
    %12 = vsyncpa [#allocation3], 0
    %s13 = scalar_lea.sflag [#allocation3], 1
    %14 = vsyncpa %s13, 0
    %15 = vsyncpa [#allocation6], 0
    %16 = vsyncpa [#allocation9], 0
    %17 = vsyncpa [#allocation4], 0
    %s18 = scalar_lea.sflag [#allocation4], 1
    %19 = vsyncpa %s18, 0
    loop: start=0, step=1, limit=4
    $region2: #{tpu_custom_call.1} parent=1 // loop_pre_header
      _
    $region3: #{tpu_custom_call.1} parent=1 // loop_header
      %s21 = sphi 0, %s25
      %p22 = scmp.ge.s32.totalorder %s21, 4
      %s31 = sphi 0, %s33
      %s34 = sphi 0, %s31
      %s35 = sphi 0, %s34
      %s51 = sphi 0, %s35
      %s55 = sphi 0, %s55
      %s57 = sphi 0, %s55
      %s58 = sphi 0, %s57
      %s72 = sphi 0, %s58
      %s76 = sphi 0, %s76
      %s78 = sphi 0, %s76
      %s79 = sphi 0, %s78
      %s93 = sphi 0, %s79
      %s97 = sphi 0, %s97
      %s99 = sphi 0, %s97
      %s100 = sphi 0, %s99
      %s114 = sphi 0, %s100
      %s118 = sphi 0, %s118
      %s120 = sphi 0, %s118
      %s121 = sphi 0, %s120
      %s135 = sphi 0, %s121
      %s139 = sphi 0, %s139
      %s141 = sphi 0, %s139
      %s142 = sphi 0, %s141
      %s156 = sphi 0, %s142
      %s160 = sphi 0, %s160
      %s162 = sphi 0, %s160
      %s163 = sphi 0, %s162
      %s177 = sphi 0, %s163
      %s183 = sphi 0, %s185
      %s186 = sphi 0, %s183
      %s187 = sphi 0, %s186
      %s203 = sphi 0, %s187
    $region4: #{tpu_custom_call.1} parent=1 // loop_header_branch
      %24 = sbr.rel (%p22) target = $region8
    $region5: #{tpu_custom_call.1} parent=1 // loop_body
      %s26 = ssub.s32 %s21, 1
      %s27 = ssub.s32 %s21, 2
      %s28 = sadd.s32 %s21, 1
      %s29 = ssub.s32 %s21, %s28
      %p30 = scmp.eq.s32.totalorder %s29, 0
      %s32 = sadd.s32 %s31, 1
      %s33 = scalar_select %p30, %s31, %s32
      %p36 = pneg %p30
      %p37 = scmp.eq.s32.totalorder %s21, 1
      %p38 = por %p36, %p37
      %p39 = scmp.ne.s32.totalorder %s31, %s34
      %p40 = scmp.eq.s32.totalorder %s21, 0
      %p41 = por %p39, %p40
      %p42 = scmp.ne.s32.totalorder %s31, %s34
      %p43 = scmp.eq.s32.totalorder %s26, 1
      %p44 = por %p42, %p43
      %p45 = scmp.ne.s32.totalorder %s34, %s35
      %p46 = scmp.eq.s32.totalorder %s26, 0
      %p47 = por %p45, %p46
      %p48 = scmp.ne.s32.totalorder %s34, %s35
      %p49 = scmp.eq.s32.totalorder %s27, 1
      %p50 = por %p48, %p49
      %p52 = scmp.ne.s32.totalorder %s35, %s51
      %p53 = scmp.eq.s32.totalorder %s27, 0
      %p54 = por %p52, %p53
      %s56 = sadd.s32 %s55, 1
      %p59 = scmp.eq.s32.totalorder %s21, 1
      %p60 = scmp.ne.s32.totalorder %s55, %s57
      %p61 = scmp.eq.s32.totalorder %s21, 0
      %p62 = por %p60, %p61
      %p63 = scmp.ne.s32.totalorder %s55, %s57
      %p64 = scmp.eq.s32.totalorder %s26, 1
      %p65 = por %p63, %p64
      %p66 = scmp.ne.s32.totalorder %s57, %s58
      %p67 = scmp.eq.s32.totalorder %s26, 0
      %p68 = por %p66, %p67
      %p69 = scmp.ne.s32.totalorder %s57, %s58
      %p70 = scmp.eq.s32.totalorder %s27, 1
      %p71 = por %p69, %p70
      %p73 = scmp.ne.s32.totalorder %s58, %s72
      %p74 = scmp.eq.s32.totalorder %s27, 0
      %p75 = por %p73, %p74
      %s77 = sadd.s32 %s76, 1
      %p80 = scmp.eq.s32.totalorder %s21, 1
      %p81 = scmp.ne.s32.totalorder %s76, %s78
      %p82 = scmp.eq.s32.totalorder %s21, 0
      %p83 = por %p81, %p82
      %p84 = scmp.ne.s32.totalorder %s76, %s78
      %p85 = scmp.eq.s32.totalorder %s26, 1
      %p86 = por %p84, %p85
      %p87 = scmp.ne.s32.totalorder %s78, %s79
      %p88 = scmp.eq.s32.totalorder %s26, 0
      %p89 = por %p87, %p88
      %p90 = scmp.ne.s32.totalorder %s78, %s79
      %p91 = scmp.eq.s32.totalorder %s27, 1
      %p92 = por %p90, %p91
      %p94 = scmp.ne.s32.totalorder %s79, %s93
      %p95 = scmp.eq.s32.totalorder %s27, 0
      %p96 = por %p94, %p95
      %s98 = sadd.s32 %s97, 1
      %p101 = scmp.eq.s32.totalorder %s21, 1
      %p102 = scmp.ne.s32.totalorder %s97, %s99
      %p103 = scmp.eq.s32.totalorder %s21, 0
      %p104 = por %p102, %p103
      %p105 = scmp.ne.s32.totalorder %s97, %s99
      %p106 = scmp.eq.s32.totalorder %s26, 1
      %p107 = por %p105, %p106
      %p108 = scmp.ne.s32.totalorder %s99, %s100
      %p109 = scmp.eq.s32.totalorder %s26, 0
      %p110 = por %p108, %p109
      %p111 = scmp.ne.s32.totalorder %s99, %s100
      %p112 = scmp.eq.s32.totalorder %s27, 1
      %p113 = por %p111, %p112
      %p115 = scmp.ne.s32.totalorder %s100, %s114
      %p116 = scmp.eq.s32.totalorder %s27, 0
      %p117 = por %p115, %p116
      %s119 = sadd.s32 %s118, 1
      %p122 = scmp.eq.s32.totalorder %s21, 1
      %p123 = scmp.ne.s32.totalorder %s118, %s120
      %p124 = scmp.eq.s32.totalorder %s21, 0
      %p125 = por %p123, %p124
      %p126 = scmp.ne.s32.totalorder %s118, %s120
      %p127 = scmp.eq.s32.totalorder %s26, 1
      %p128 = por %p126, %p127
      %p129 = scmp.ne.s32.totalorder %s120, %s121
      %p130 = scmp.eq.s32.totalorder %s26, 0
      %p131 = por %p129, %p130
      %p132 = scmp.ne.s32.totalorder %s120, %s121
      %p133 = scmp.eq.s32.totalorder %s27, 1
      %p134 = por %p132, %p133
      %p136 = scmp.ne.s32.totalorder %s121, %s135
      %p137 = scmp.eq.s32.totalorder %s27, 0
      %p138 = por %p136, %p137
      %s140 = sadd.s32 %s139, 1
      %p143 = scmp.eq.s32.totalorder %s21, 1
      %p144 = scmp.ne.s32.totalorder %s139, %s141
      %p145 = scmp.eq.s32.totalorder %s21, 0
      %p146 = por %p144, %p145
      %p147 = scmp.ne.s32.totalorder %s139, %s141
      %p148 = scmp.eq.s32.totalorder %s26, 1
      %p149 = por %p147, %p148
      %p150 = scmp.ne.s32.totalorder %s141, %s142
      %p151 = scmp.eq.s32.totalorder %s26, 0
      %p152 = por %p150, %p151
      %p153 = scmp.ne.s32.totalorder %s141, %s142
      %p154 = scmp.eq.s32.totalorder %s27, 1
      %p155 = por %p153, %p154
      %p157 = scmp.ne.s32.totalorder %s142, %s156
      %p158 = scmp.eq.s32.totalorder %s27, 0
      %p159 = por %p157, %p158
      %s161 = sadd.s32 %s160, 1
      %p164 = scmp.eq.s32.totalorder %s21, 1
      %p165 = scmp.ne.s32.totalorder %s160, %s162
      %p166 = scmp.eq.s32.totalorder %s21, 0
      %p167 = por %p165, %p166
      %p168 = scmp.ne.s32.totalorder %s160, %s162
      %p169 = scmp.eq.s32.totalorder %s26, 1
      %p170 = por %p168, %p169
      %p171 = scmp.ne.s32.totalorder %s162, %s163
      %p172 = scmp.eq.s32.totalorder %s26, 0
      %p173 = por %p171, %p172
      %p174 = scmp.ne.s32.totalorder %s162, %s163
      %p175 = scmp.eq.s32.totalorder %s27, 1
      %p176 = por %p174, %p175
      %p178 = scmp.ne.s32.totalorder %s163, %s177
      %p179 = scmp.eq.s32.totalorder %s27, 0
      %p180 = por %p178, %p179
      %s181 = ssub.s32 %s21, %s28
      %p182 = scmp.eq.s32.totalorder %s181, 0
      %s184 = sadd.s32 %s183, 1
      %s185 = scalar_select %p182, %s183, %s184
      %p188 = pneg %p182
      %p189 = scmp.eq.s32.totalorder %s21, 1
      %p190 = por %p188, %p189
      %p191 = scmp.ne.s32.totalorder %s183, %s186
      %p192 = scmp.eq.s32.totalorder %s21, 0
      %p193 = por %p191, %p192
      %p194 = scmp.ne.s32.totalorder %s183, %s186
      %p195 = scmp.eq.s32.totalorder %s26, 1
      %p196 = por %p194, %p195
      %p197 = scmp.ne.s32.totalorder %s186, %s187
      %p198 = scmp.eq.s32.totalorder %s26, 0
      %p199 = por %p197, %p198
      %p200 = scmp.ne.s32.totalorder %s186, %s187
      %p201 = scmp.eq.s32.totalorder %s27, 1
      %p202 = por %p200, %p201
      %p204 = scmp.ne.s32.totalorder %s187, %s203
      %p205 = scmp.eq.s32.totalorder %s27, 0
      %p206 = por %p204, %p205
      %p207 = scmp.le.s32.totalorder 1, %s21
      %p208 = scmp.lt.s32.totalorder %s21, 3
      %p209 = pnand %p207, %p208
      %p210 = pneg %p209
      // Predicated region
      $region9: #{tpu_custom_call.1} parent=5 // pred_check
        _
      $region10: #{tpu_custom_call.1} parent=5 // pred_check_branch
        %212 = sbr.rel (%p209) target = $region12
      $region11: #{tpu_custom_call.1} parent=5 // pred_region
        %s213 = ssub.s32 %s21, 1
        // Predicated region
        $region13: #{tpu_custom_call.1} parent=11 // pred_check
          %p214 = pneg %p68
        $region14: #{tpu_custom_call.1} parent=11 // pred_check_branch
          %216 = sbr.rel (%p214) target = $region16
        $region15: #{tpu_custom_call.1} parent=11 // pred_region
          %s218 = ssub.s32 1024, 1024
          %219 = vsyncadd [#allocation6], %s218
          %s220 = sshll.u32 [#allocation5], 4
          %s221 = int_to_ptr.vmem [resolvable:$true] %s220
          %226 = dma.hbm_to_vmem [thread:$0]  %s1, 1024, %s221, [#allocation6], 64, 64, 4
        $region16: #{tpu_custom_call.1} parent=11 // pred_fallthru
          _
        // Predicated region
        $region17: #{tpu_custom_call.1} parent=11 // pred_check
          %p227 = pneg %p89
        $region18: #{tpu_custom_call.1} parent=11 // pred_check_branch
          %229 = sbr.rel (%p227) target = $region20
        $region19: #{tpu_custom_call.1} parent=11 // pred_region
          _
        $region20: #{tpu_custom_call.1} parent=11 // pred_fallthru
          _
        // Predicated region
        $region21: #{tpu_custom_call.1} parent=11 // pred_check
          %p230 = pneg %p110
        $region22: #{tpu_custom_call.1} parent=11 // pred_check_branch
          %232 = sbr.rel (%p230) target = $region24
        $region23: #{tpu_custom_call.1} parent=11 // pred_region
          %s234 = ssub.s32 1024, 1024
          %235 = vsyncadd [#allocation6], %s234
          %s236 = sshll.u32 [#allocation7], 4
          %s237 = int_to_ptr.vmem [resolvable:$true] %s236
          %242 = dma.hbm_to_vmem [thread:$0]  %s3, 1024, %s237, [#allocation6], 64, 64, 4
        $region24: #{tpu_custom_call.1} parent=11 // pred_fallthru
          _
        // Predicated region
        $region25: #{tpu_custom_call.1} parent=11 // pred_check
          %p243 = pneg %p131
        $region26: #{tpu_custom_call.1} parent=11 // pred_check_branch
          %245 = sbr.rel (%p243) target = $region28
        $region27: #{tpu_custom_call.1} parent=11 // pred_region
          _
        $region28: #{tpu_custom_call.1} parent=11 // pred_fallthru
          _
        // Predicated region
        $region29: #{tpu_custom_call.1} parent=11 // pred_check
          %p246 = pneg %p152
        $region30: #{tpu_custom_call.1} parent=11 // pred_check_branch
          %248 = sbr.rel (%p246) target = $region32
        $region31: #{tpu_custom_call.1} parent=11 // pred_region
          %s250 = ssub.s32 1024, 1024
          %251 = vsyncadd [#allocation9], %s250
          %s252 = sshll.u32 [#allocation8], 4
          %s253 = int_to_ptr.vmem [resolvable:$true] %s252
          %258 = dma.hbm_to_vmem [thread:$0]  %s5, 1024, %s253, [#allocation9], 64, 64, 4
        $region32: #{tpu_custom_call.1} parent=11 // pred_fallthru
          _
        // Predicated region
        $region33: #{tpu_custom_call.1} parent=11 // pred_check
          %p259 = pneg %p173
        $region34: #{tpu_custom_call.1} parent=11 // pred_check_branch
          %261 = sbr.rel (%p259) target = $region36
        $region35: #{tpu_custom_call.1} parent=11 // pred_region
          _
        $region36: #{tpu_custom_call.1} parent=11 // pred_fallthru
          _
      $region12: #{tpu_custom_call.1} parent=5 // pred_fallthru
        _
      %p262 = scmp.lt.s32.totalorder %s21, 2
      // Predicated region
      $region37: #{tpu_custom_call.1} parent=5 // pred_check
        %p263 = pneg %p262
      $region38: #{tpu_custom_call.1} parent=5 // pred_check_branch
        %265 = sbr.rel (%p263) target = $region40
      $region39: #{tpu_custom_call.1} parent=5 // pred_region
        // Predicated region
        $region41: #{tpu_custom_call.1} parent=39 // pred_check
          %p266 = pneg %p41
        $region42: #{tpu_custom_call.1} parent=39 // pred_check_branch
          %268 = sbr.rel (%p266) target = $region44
        $region43: #{tpu_custom_call.1} parent=39 // pred_region
          %s269 = sand.u32 %s31, 1
          %s270 = scalar_lea.sflag [#allocation3], %s269
          %s271 = sand.u32 %s31, 1
          %s272 = smul.addr %s271, 8
          %s273 = scalar_lea.vmem [#allocation2], %s272
          %s274 = smul.u32 2, %s21
          %s276 = ssub.s32 128, 128
          %277 = vsyncadd %s270, %s276
          %s278 = smul.addr %s274, 64
          %s279 = scalar_lea.hbm %s0, %s278
          %s280 = sshll.u32 %s273, 4
          %s281 = int_to_ptr.vmem [resolvable:$true] %s280
          %286 = dma.hbm_to_vmem [thread:$0]  %s279, 128, %s281, %s270, 64, 64, 4
        $region44: #{tpu_custom_call.1} parent=39 // pred_fallthru
          _
      $region40: #{tpu_custom_call.1} parent=5 // pred_fallthru
        _
      %p287 = scmp.le.s32.totalorder 1, %s21
      %p288 = scmp.lt.s32.totalorder %s21, 3
      %p289 = pnand %p287, %p288
      %p290 = pneg %p289
      // Predicated region
      $region45: #{tpu_custom_call.1} parent=5 // pred_check
        _
      $region46: #{tpu_custom_call.1} parent=5 // pred_check_branch
        %292 = sbr.rel (%p289) target = $region48
      $region47: #{tpu_custom_call.1} parent=5 // pred_region
        %s293 = ssub.s32 %s21, 1
        %s294 = sand.u32 %s34, 1
        %s295 = scalar_lea.sflag [#allocation3], %s294
        %s296 = sand.u32 %s34, 1
        %s297 = smul.addr %s296, 8
        %s298 = scalar_lea.vmem [#allocation2], %s297
        // Predicated region
        $region49: #{tpu_custom_call.1} parent=47 // pred_check
          %p299 = pneg %p47
        $region50: #{tpu_custom_call.1} parent=47 // pred_check_branch
          %301 = sbr.rel (%p299) target = $region52
        $region51: #{tpu_custom_call.1} parent=47 // pred_region
          %302 = dma.done %s295, 128
        $region52: #{tpu_custom_call.1} parent=47 // pred_fallthru
          _
        // Predicated region
        $region53: #{tpu_custom_call.1} parent=47 // pred_check
          %p303 = pneg %p68
        $region54: #{tpu_custom_call.1} parent=47 // pred_check_branch
          %305 = sbr.rel (%p303) target = $region56
        $region55: #{tpu_custom_call.1} parent=47 // pred_region
          %306 = dma.done [#allocation6], 1024
        $region56: #{tpu_custom_call.1} parent=47 // pred_fallthru
          _
        // Predicated region
        $region57: #{tpu_custom_call.1} parent=47 // pred_check
          %p307 = pneg %p110
        $region58: #{tpu_custom_call.1} parent=47 // pred_check_branch
          %309 = sbr.rel (%p307) target = $region60
        $region59: #{tpu_custom_call.1} parent=47 // pred_region
          %310 = dma.done [#allocation6], 1024
        $region60: #{tpu_custom_call.1} parent=47 // pred_fallthru
          _
        // Predicated region
        $region61: #{tpu_custom_call.1} parent=47 // pred_check
          %p311 = pneg %p152
        $region62: #{tpu_custom_call.1} parent=47 // pred_check_branch
          %313 = sbr.rel (%p311) target = $region64
        $region63: #{tpu_custom_call.1} parent=47 // pred_region
          %314 = dma.done [#allocation9], 1024
        $region64: #{tpu_custom_call.1} parent=47 // pred_fallthru
          _
        %s315 = sand.u32 %s34, 1
        %s316 = scalar_lea.sflag [#allocation3], %s315
        %s317 = sand.u32 %s34, 1
        %s318 = smul.addr %s317, 8
        %s319 = scalar_lea.vmem [#allocation2], %s318
        %p320 = pneg %p47
        %p321 = pneg %p44
        %p322 = pneg %p68
        %p323 = pneg %p65
        %p324 = pneg %p89
        %p325 = pneg %p86
        %p326 = pneg %p110
        %p327 = pneg %p107
        %p328 = pneg %p131
        %p329 = pneg %p128
        %p330 = pneg %p152
        %p331 = pneg %p149
        %p332 = pneg %p173
        %p333 = pneg %p170
        %p334 = pneg %p199
        %p335 = pneg %p196
        %s336 = sand.u32 %s186, 1
        %s337 = scalar_lea.sflag [#allocation4], %s336
        %s338 = sand.u32 %s186, 1
        %s339 = smul.addr %s338, 8
        %s340 = scalar_lea.vmem [#allocation10], %s339
        %s341 = smul.u32 2, %s26
        %s342 = smul.u32 2, %s26
        %v344 = vld [vmem:[%s298] sm:$0xf]
        %v345 = vld [vmem:[%s298 + $0x4] sm:$0xf]
        %v346 = vunpack.c.l.bf16 %v344
        %v347 = vunpack.c.l.bf16 %v345
        %348 = vadd.xlane.f32.xlu0 %v346
        %v349 = vpop.xlane.xlu0 %348
        %350 = vadd.xlane.f32.xlu0 %v347
        %v351 = vpop.xlane.xlu0 %350
        %v352 = vmul.f32 %v349, 0.0078125
        %v353 = vmul.f32 %v351, 0.0078125
        %v354 = vsub.f32 %v346, %v352
        %v355 = vsub.f32 %v347, %v353
        %v356 = vmul.f32 %v354, %v354
        %v357 = vmul.f32 %v355, %v355
        %358 = vadd.xlane.f32.xlu0 %v356
        %v359 = vpop.xlane.xlu0 %358
        %360 = vadd.xlane.f32.xlu0 %v357
        %v361 = vpop.xlane.xlu0 %360
        %v362 = vmul.f32 %v359, 0.0078125
        %v363 = vmul.f32 %v361, 0.0078125
        %v364 = vadd.f32 %v362, 1e-05
        %v365 = vadd.f32 %v363, 1e-05
        %v366 = vrsqrt.pop %v364
        %v367 = vrsqrt.pop %v365
        %v368 = vmul.f32 %v354, %v366
        %v369 = vmul.f32 %v355, %v367
        %v370 = vpack.c.bf16 %v369, %v368
        %v371 = vld [vmem:[#allocation5] sm:$0xf]
        %v372 = vld [vmem:[#allocation5 + $0x4] sm:$0xf]
        %v373 = vld [vmem:[#allocation5 + $0x8] sm:$0xf]
        %v374 = vld [vmem:[#allocation5 + $0xc] sm:$0xf]
        %v375 = vld [vmem:[#allocation5 + $0x10] sm:$0xf]
        %v376 = vld [vmem:[#allocation5 + $0x14] sm:$0xf]
        %v377 = vld [vmem:[#allocation5 + $0x18] sm:$0xf]
        %v378 = vld [vmem:[#allocation5 + $0x1c] sm:$0xf]
        %v379 = vld [vmem:[#allocation5 + $0x20] sm:$0xf]
        %v380 = vld [vmem:[#allocation5 + $0x24] sm:$0xf]
        %v381 = vld [vmem:[#allocation5 + $0x28] sm:$0xf]
        %v382 = vld [vmem:[#allocation5 + $0x2c] sm:$0xf]
        %v383 = vld [vmem:[#allocation5 + $0x30] sm:$0xf]
        %v384 = vld [vmem:[#allocation5 + $0x34] sm:$0xf]
        %v385 = vld [vmem:[#allocation5 + $0x38] sm:$0xf]
        %v386 = vld [vmem:[#allocation5 + $0x3c] sm:$0xf]
        %v387 = vld [vmem:[%s2] sm:$0x1]
        %v389 = vlaneseq
        %v390 = vshrl.u32 %v389, 7
        %v391 = vsub.s32 0, %v390
        %v392 = vrot.slane %v387, %v391
        %v410 = vunpack.c.l.b16 %v371
        %v411 = vunpack.c.l.b16 %v372
        %v412 = vunpack.c.l.b16 %v373
        %v413 = vunpack.c.l.b16 %v374
        %v414 = vunpack.c.l.b16 %v375
        %v415 = vunpack.c.l.b16 %v376
        %v416 = vunpack.c.l.b16 %v377
        %v417 = vunpack.c.l.b16 %v378
        %v418 = vunpack.c.l.b16 %v379
        %v419 = vunpack.c.l.b16 %v380
        %v420 = vunpack.c.l.b16 %v381
        %v421 = vunpack.c.l.b16 %v382
        %v422 = vunpack.c.l.b16 %v383
        %v423 = vunpack.c.l.b16 %v384
        %v424 = vunpack.c.l.b16 %v385
        %v425 = vunpack.c.l.b16 %v386
        %v426 = vpack.c.b16 %v411, %v410
        %v427 = vpack.c.b16 %v413, %v412
        %v428 = vpack.c.b16 %v415, %v414
        %v429 = vpack.c.b16 %v417, %v416
        %v430 = vpack.c.b16 %v419, %v418
        %v431 = vpack.c.b16 %v421, %v420
        %v432 = vpack.c.b16 %v423, %v422
        %v433 = vpack.c.b16 %v425, %v424
        %442 = vmatprep.subr.bf16.mxu0 0
        %443 = vmatpush1.bf16.msra.mxu0 %v426
        %444 = vmatprep.subr.bf16.mxu0 0
        %445 = vmatpush1.bf16.msra.mxu0 %v427
        %446 = vmatprep.subr.bf16.mxu0 0
        %447 = vmatpush1.bf16.msra.mxu0 %v428
        %448 = vmatprep.subr.bf16.mxu0 0
        %449 = vmatpush1.bf16.msra.mxu0 %v429
        %450 = vmatprep.subr.bf16.mxu0 0
        %451 = vmatpush1.bf16.msra.mxu0 %v430
        %452 = vmatprep.subr.bf16.mxu0 0
        %453 = vmatpush1.bf16.msra.mxu0 %v431
        %454 = vmatprep.subr.bf16.mxu0 0
        %455 = vmatpush1.bf16.msra.mxu0 %v432
        %456 = vmatprep.subr.bf16.mxu0 0
        %457 = vmatpush1.bf16.msra.mxu0 %v433
        %458 = vmatprep.subr.bf16.mxu0 0
        %459 = vmatpush1.bf16.msra.mxu0 0
        %460 = vmatprep.subr.bf16.mxu0 0
        %461 = vmatpush1.bf16.msra.mxu0 0
        %462 = vmatprep.subr.bf16.mxu0 0
        %463 = vmatpush1.bf16.msra.mxu0 0
        %464 = vmatprep.subr.bf16.mxu0 0
        %465 = vmatpush1.bf16.msra.mxu0 0
        %466 = vmatprep.subr.bf16.mxu0 0
        %467 = vmatpush1.bf16.msra.mxu0 0
        %468 = vmatprep.subr.bf16.mxu0 0
        %469 = vmatpush1.bf16.msra.mxu0 0
        %470 = vmatprep.subr.bf16.mxu0 0
        %471 = vmatpush1.bf16.msra.mxu0 0
        %472 = vmatprep.subr.bf16.mxu0 0
        %473 = vmatpush1.bf16.msra.mxu0 0
        %474 = vmatprep.mubr.bf16.mxu0 0
        %475 = vmatmul.mubr.bf16.gmra.mrb[0].mxu0 %v370
        %v476 = vpop.f32.mrb[0].mxu0
        %v477 = vadd.f32 %v392, %v476
        %v478 = vpop.f32.mrb[0].mxu0
        %v479 = vpop.f32.mrb[0].mxu0
        %v480 = vadd.f32 %v392, %v479
        %v481 = vpop.f32.mrb[0].mxu0
        %482 = vdwg.mxu0
        %v483 = vadd.f32 %v477, %v346
        %v484 = vadd.f32 %v480, %v347
        %485 = vadd.xlane.f32.xlu0 %v483
        %v486 = vpop.xlane.xlu0 %485
        %487 = vadd.xlane.f32.xlu0 %v484
        %v488 = vpop.xlane.xlu0 %487
        %v489 = vmul.f32 %v486, 0.0078125
        %v490 = vmul.f32 %v488, 0.0078125
        %v491 = vsub.f32 %v483, %v489
        %v492 = vsub.f32 %v484, %v490
        %v493 = vmul.f32 %v491, %v491
        %v494 = vmul.f32 %v492, %v492
        %495 = vadd.xlane.f32.xlu0 %v493
        %v496 = vpop.xlane.xlu0 %495
        %497 = vadd.xlane.f32.xlu0 %v494
        %v498 = vpop.xlane.xlu0 %497
        %v499 = vmul.f32 %v496, 0.0078125
        %v500 = vmul.f32 %v498, 0.0078125
        %v501 = vadd.f32 %v499, 1e-05
        %v502 = vadd.f32 %v500, 1e-05
        %v503 = vrsqrt.pop %v501
        %v504 = vrsqrt.pop %v502
        %v505 = vmul.f32 %v491, %v503
        %v506 = vmul.f32 %v492, %v504
        %v507 = vpack.c.bf16 %v506, %v505
        %v508 = vld [vmem:[#allocation7] sm:$0xf]
        %v509 = vld [vmem:[#allocation7 + $0x4] sm:$0xf]
        %v510 = vld [vmem:[#allocation7 + $0x8] sm:$0xf]
        %v511 = vld [vmem:[#allocation7 + $0xc] sm:$0xf]
        %v512 = vld [vmem:[#allocation7 + $0x10] sm:$0xf]
        %v513 = vld [vmem:[#allocation7 + $0x14] sm:$0xf]
        %v514 = vld [vmem:[#allocation7 + $0x18] sm:$0xf]
        %v515 = vld [vmem:[#allocation7 + $0x1c] sm:$0xf]
        %v516 = vld [vmem:[#allocation7 + $0x20] sm:$0xf]
        %v517 = vld [vmem:[#allocation7 + $0x24] sm:$0xf]
        %v518 = vld [vmem:[#allocation7 + $0x28] sm:$0xf]
        %v519 = vld [vmem:[#allocation7 + $0x2c] sm:$0xf]
        %v520 = vld [vmem:[#allocation7 + $0x30] sm:$0xf]
        %v521 = vld [vmem:[#allocation7 + $0x34] sm:$0xf]
        %v522 = vld [vmem:[#allocation7 + $0x38] sm:$0xf]
        %v523 = vld [vmem:[#allocation7 + $0x3c] sm:$0xf]
        %v524 = vld [vmem:[%s4] sm:$0x1]
        %v526 = vlaneseq
        %v527 = vshrl.u32 %v526, 7
        %v528 = vsub.s32 0, %v527
        %v529 = vrot.slane %v524, %v528
        %v547 = vunpack.c.l.b16 %v508
        %v548 = vunpack.c.l.b16 %v509
        %v549 = vunpack.c.l.b16 %v510
        %v550 = vunpack.c.l.b16 %v511
        %v551 = vunpack.c.l.b16 %v512
        %v552 = vunpack.c.l.b16 %v513
        %v553 = vunpack.c.l.b16 %v514
        %v554 = vunpack.c.l.b16 %v515
        %v555 = vunpack.c.l.b16 %v516
        %v556 = vunpack.c.l.b16 %v517
        %v557 = vunpack.c.l.b16 %v518
        %v558 = vunpack.c.l.b16 %v519
        %v559 = vunpack.c.l.b16 %v520
        %v560 = vunpack.c.l.b16 %v521
        %v561 = vunpack.c.l.b16 %v522
        %v562 = vunpack.c.l.b16 %v523
        %v563 = vpack.c.b16 %v548, %v547
        %v564 = vpack.c.b16 %v550, %v549
        %v565 = vpack.c.b16 %v552, %v551
        %v566 = vpack.c.b16 %v554, %v553
        %v567 = vpack.c.b16 %v556, %v555
        %v568 = vpack.c.b16 %v558, %v557
        %v569 = vpack.c.b16 %v560, %v559
        %v570 = vpack.c.b16 %v562, %v561
        %579 = vmatprep.subr.bf16.mxu0 0
        %580 = vmatpush1.bf16.msra.mxu0 %v563
        %581 = vmatprep.subr.bf16.mxu0 0
        %582 = vmatpush1.bf16.msra.mxu0 %v564
        %583 = vmatprep.subr.bf16.mxu0 0
        %584 = vmatpush1.bf16.msra.mxu0 %v565
        %585 = vmatprep.subr.bf16.mxu0 0
        %586 = vmatpush1.bf16.msra.mxu0 %v566
        %587 = vmatprep.subr.bf16.mxu0 0
        %588 = vmatpush1.bf16.msra.mxu0 %v567
        %589 = vmatprep.subr.bf16.mxu0 0
        %590 = vmatpush1.bf16.msra.mxu0 %v568
        %591 = vmatprep.subr.bf16.mxu0 0
        %592 = vmatpush1.bf16.msra.mxu0 %v569
        %593 = vmatprep.subr.bf16.mxu0 0
        %594 = vmatpush1.bf16.msra.mxu0 %v570
        %595 = vmatprep.subr.bf16.mxu0 0
        %596 = vmatpush1.bf16.msra.mxu0 0
        %597 = vmatprep.subr.bf16.mxu0 0
        %598 = vmatpush1.bf16.msra.mxu0 0
        %599 = vmatprep.subr.bf16.mxu0 0
        %600 = vmatpush1.bf16.msra.mxu0 0
        %601 = vmatprep.subr.bf16.mxu0 0
        %602 = vmatpush1.bf16.msra.mxu0 0
        %603 = vmatprep.subr.bf16.mxu0 0
        %604 = vmatpush1.bf16.msra.mxu0 0
        %605 = vmatprep.subr.bf16.mxu0 0
        %606 = vmatpush1.bf16.msra.mxu0 0
        %607 = vmatprep.subr.bf16.mxu0 0
        %608 = vmatpush1.bf16.msra.mxu0 0
        %609 = vmatprep.subr.bf16.mxu0 0
        %610 = vmatpush1.bf16.msra.mxu0 0
        %611 = vmatprep.mubr.bf16.mxu0 0
        %612 = vmatmul.mubr.bf16.gmra.mrb[0].mxu0 %v507
        %v613 = vpop.f32.mrb[0].mxu0
        %v614 = vadd.f32 %v529, %v613
        %v615 = vpop.f32.mrb[0].mxu0
        %v616 = vpop.f32.mrb[0].mxu0
        %v617 = vadd.f32 %v529, %v616
        %v618 = vpop.f32.mrb[0].mxu0
        %619 = vdwg.mxu0
        %v620 = vmul.f32 %v614, %v614
        %v621 = vmul.f32 %v617, %v617
        %v622 = vmul.f32 %v614, %v620
        %v623 = vmul.f32 %v617, %v621
        %v624 = vmul.f32 %v622, 0.044715
        %v625 = vmul.f32 %v623, 0.044715
        %v626 = vadd.f32 %v614, %v624
        %v627 = vadd.f32 %v617, %v625
        %v628 = vmul.f32 %v626, 0.7978846
        %v629 = vmul.f32 %v627, 0.7978846
        %v630 = vtanh.pop %v628
        %v631 = vtanh.pop %v629
        %v632 = vadd.f32 %v630, 1.0
        %v633 = vadd.f32 %v631, 1.0
        %v634 = vmul.f32 %v632, 0.5
        %v635 = vmul.f32 %v633, 0.5
        %v636 = vmul.f32 %v614, %v634
        %v637 = vmul.f32 %v617, %v635
        %v638 = vpack.c.bf16 %v637, %v636
        %v639 = vld [vmem:[#allocation8] sm:$0xf]
        %v640 = vld [vmem:[#allocation8 + $0x4] sm:$0xf]
        %v641 = vld [vmem:[#allocation8 + $0x8] sm:$0xf]
        %v642 = vld [vmem:[#allocation8 + $0xc] sm:$0xf]
        %v643 = vld [vmem:[#allocation8 + $0x10] sm:$0xf]
        %v644 = vld [vmem:[#allocation8 + $0x14] sm:$0xf]
        %v645 = vld [vmem:[#allocation8 + $0x18] sm:$0xf]
        %v646 = vld [vmem:[#allocation8 + $0x1c] sm:$0xf]
        %v647 = vld [vmem:[#allocation8 + $0x20] sm:$0xf]
        %v648 = vld [vmem:[#allocation8 + $0x24] sm:$0xf]
        %v649 = vld [vmem:[#allocation8 + $0x28] sm:$0xf]
        %v650 = vld [vmem:[#allocation8 + $0x2c] sm:$0xf]
        %v651 = vld [vmem:[#allocation8 + $0x30] sm:$0xf]
        %v652 = vld [vmem:[#allocation8 + $0x34] sm:$0xf]
        %v653 = vld [vmem:[#allocation8 + $0x38] sm:$0xf]
        %v654 = vld [vmem:[#allocation8 + $0x3c] sm:$0xf]
        %v655 = vld [vmem:[%s6] sm:$0x1]
        %v657 = vlaneseq
        %v658 = vshrl.u32 %v657, 7
        %v659 = vsub.s32 0, %v658
        %v660 = vrot.slane %v655, %v659
        %v678 = vunpack.c.l.b16 %v639
        %v679 = vunpack.c.l.b16 %v640
        %v680 = vunpack.c.l.b16 %v641
        %v681 = vunpack.c.l.b16 %v642
        %v682 = vunpack.c.l.b16 %v643
        %v683 = vunpack.c.l.b16 %v644
        %v684 = vunpack.c.l.b16 %v645
        %v685 = vunpack.c.l.b16 %v646
        %v686 = vunpack.c.l.b16 %v647
        %v687 = vunpack.c.l.b16 %v648
        %v688 = vunpack.c.l.b16 %v649
        %v689 = vunpack.c.l.b16 %v650
        %v690 = vunpack.c.l.b16 %v651
        %v691 = vunpack.c.l.b16 %v652
        %v692 = vunpack.c.l.b16 %v653
        %v693 = vunpack.c.l.b16 %v654
        %v694 = vpack.c.b16 %v679, %v678
        %v695 = vpack.c.b16 %v681, %v680
        %v696 = vpack.c.b16 %v683, %v682
        %v697 = vpack.c.b16 %v685, %v684
        %v698 = vpack.c.b16 %v687, %v686
        %v699 = vpack.c.b16 %v689, %v688
        %v700 = vpack.c.b16 %v691, %v690
        %v701 = vpack.c.b16 %v693, %v692
        %710 = vmatprep.subr.bf16.mxu0 0
        %711 = vmatpush1.bf16.msra.mxu0 %v694
        %712 = vmatprep.subr.bf16.mxu0 0
        %713 = vmatpush1.bf16.msra.mxu0 %v695
        %714 = vmatprep.subr.bf16.mxu0 0
        %715 = vmatpush1.bf16.msra.mxu0 %v696
        %716 = vmatprep.subr.bf16.mxu0 0
        %717 = vmatpush1.bf16.msra.mxu0 %v697
        %718 = vmatprep.subr.bf16.mxu0 0
        %719 = vmatpush1.bf16.msra.mxu0 %v698
        %720 = vmatprep.subr.bf16.mxu0 0
        %721 = vmatpush1.bf16.msra.mxu0 %v699
        %722 = vmatprep.subr.bf16.mxu0 0
        %723 = vmatpush1.bf16.msra.mxu0 %v700
        %724 = vmatprep.subr.bf16.mxu0 0
        %725 = vmatpush1.bf16.msra.mxu0 %v701
        %726 = vmatprep.subr.bf16.mxu0 0
        %727 = vmatpush1.bf16.msra.mxu0 0
        %728 = vmatprep.subr.bf16.mxu0 0
        %729 = vmatpush1.bf16.msra.mxu0 0
        %730 = vmatprep.subr.bf16.mxu0 0
        %731 = vmatpush1.bf16.msra.mxu0 0
        %732 = vmatprep.subr.bf16.mxu0 0
        %733 = vmatpush1.bf16.msra.mxu0 0
        %734 = vmatprep.subr.bf16.mxu0 0
        %735 = vmatpush1.bf16.msra.mxu0 0
        %736 = vmatprep.subr.bf16.mxu0 0
        %737 = vmatpush1.bf16.msra.mxu0 0
        %738 = vmatprep.subr.bf16.mxu0 0
        %739 = vmatpush1.bf16.msra.mxu0 0
        %740 = vmatprep.subr.bf16.mxu0 0
        %741 = vmatpush1.bf16.msra.mxu0 0
        %742 = vmatprep.mubr.bf16.mxu0 0
        %743 = vmatmul.mubr.bf16.gmra.mrb[0].mxu0 %v638
        %v744 = vpop.f32.mrb[0].mxu0
        %v745 = vadd.f32 %v660, %v744
        %v746 = vpop.f32.mrb[0].mxu0
        %v747 = vpop.f32.mrb[0].mxu0
        %v748 = vadd.f32 %v660, %v747
        %v749 = vpop.f32.mrb[0].mxu0
        %750 = vdwg.mxu0
        %v751 = vadd.f32 %v745, %v346
        %v752 = vadd.f32 %v748, %v347
        %v753 = vpack.c.bf16 %v752, %v751
        %v755 = vunpack.c.l.b16 %v753
        %v756 = vunpack.c.h.b16 %v753
        %v757 = vpack.c.b16 %v755, %v755
        %v758 = vpack.c.b16 %v756, %v756
        %761 = vst [vmem:[%s340] sm:$0xf] %v757
        %762 = vst [vmem:[%s340 + $0x4] sm:$0xf] %v758
        %s763 = sand.u32 %s186, 1
        %s764 = scalar_lea.sflag [#allocation4], %s763
        %s765 = sand.u32 %s186, 1
        %s766 = smul.addr %s765, 8
        %s767 = scalar_lea.vmem [#allocation10], %s766
        // Predicated region
        $region65: #{tpu_custom_call.1} parent=47 // pred_check
          %p768 = pneg %p196
        $region66: #{tpu_custom_call.1} parent=47 // pred_check_branch
          %770 = sbr.rel (%p768) target = $region68
        $region67: #{tpu_custom_call.1} parent=47 // pred_region
          %s771 = smul.u32 2, %s26
          %s773 = ssub.s32 128, 128
          %774 = vsyncadd %s764, %s773
          %s775 = smul.addr %s771, 64
          %s776 = scalar_lea.hbm %s7, %s775
          %s777 = sshll.u32 %s767, 4
          %s778 = int_to_ptr.vmem [resolvable:$true] %s777
          %783 = dma.vmem_to_hbm [thread:$0]  %s778, 128, %s776, %s764, 64, 64, 4
        $region68: #{tpu_custom_call.1} parent=47 // pred_fallthru
          _
      $region48: #{tpu_custom_call.1} parent=5 // pred_fallthru
        _
      %p784 = scmp.le.s32.totalorder 2, %s21
      // Predicated region
      $region69: #{tpu_custom_call.1} parent=5 // pred_check
        %p785 = pneg %p784
      $region70: #{tpu_custom_call.1} parent=5 // pred_check_branch
        %787 = sbr.rel (%p785) target = $region72
      $region71: #{tpu_custom_call.1} parent=5 // pred_region
        %s788 = ssub.s32 %s21, 2
        // Predicated region
        $region73: #{tpu_custom_call.1} parent=71 // pred_check
          %p789 = pneg %p202
        $region74: #{tpu_custom_call.1} parent=71 // pred_check_branch
          %791 = sbr.rel (%p789) target = $region76
        $region75: #{tpu_custom_call.1} parent=71 // pred_region
          %s792 = sand.u32 %s187, 1
          %s793 = scalar_lea.sflag [#allocation4], %s792
          %s794 = sand.u32 %s187, 1
          %s795 = smul.addr %s794, 8
          %s796 = scalar_lea.vmem [#allocation10], %s795
          %797 = dma.done %s793, 128
        $region76: #{tpu_custom_call.1} parent=71 // pred_fallthru
          _
      $region72: #{tpu_custom_call.1} parent=5 // pred_fallthru
        _
    $region6: #{tpu_custom_call.1} parent=1 // loop_footer
      %s25 = sadd.s32 1, %s21
    $region7: #{tpu_custom_call.1} parent=1 // loop_footer_branch
      %20 = sbr.rel target = $region3
    $region8: #{tpu_custom_call.1} parent=1 // loop_exit
      _
    %798 = vsyncpa [#allocation3], 1
    %s799 = scalar_lea.sflag [#allocation3], 1
    %800 = vsyncpa %s799, 1
    %801 = vsyncpa [#allocation6], 1
    %802 = vsyncpa [#allocation9], 1
    %803 = vsyncpa [#allocation4], 1
    %s804 = scalar_lea.sflag [#allocation4], 1
    %805 = vsyncpa %s804, 1

</llo_original>
